<compile_context>
chip_gen: v5e
topology: v5e:2x2
jax: 0.10.0
libtpu: 0.0.40
codegen_flags: <defaults>
</compile_context>

<pallas_src>
import jax
import jax.numpy as jnp
from jax import lax
from jax.experimental import pallas as pl
from jax.experimental.pallas import tpu as pltpu


def _round_up(x, m):
    return (x + m - 1) // m * m


def _isne_kernel(src_ref, dst_ref, emb_ref, out_ref, acc_ref, cnt_ref):
    """Fused ISNE forward (embedding gather + scatter-mean).

    Grid: (M_pad // TM  [parallel],  E_pad // TE  [arbitrary, reduction]).

    src_ref : (1, TE)        int32  -- embedding-row id of each edge source
    dst_ref : (1, TE)        int32  -- scatter destination (-1 for padded edges)
    emb_ref : (N_pad, H_pad) bf16   -- padded embedding table (VMEM resident)
    out_ref : (TM, H_pad)    f32    -- scatter_mean result for this output tile
    acc_ref : (TM, H_pad)    f32    -- running per-destination feature sums
    cnt_ref : (TM, 1)        f32    -- running per-destination edge counts
    """
    i = pl.program_id(0)                 # output-row tile
    k = pl.program_id(1)                 # edge tile (reduction axis)
    TM = acc_ref.shape[0]
    TE = src_ref.shape[1]
    N_pad = emb_ref.shape[0]

    @pl.when(k == 0)
    def _():
        acc_ref[...] = jnp.zeros_like(acc_ref)
        cnt_ref[...] = jnp.zeros_like(cnt_ref)

    src = src_ref[0, :]                  # (TE,) lane-dense
    dst = dst_ref[0, :]                  # (TE,)

    # Gather vs_k[e, :] = emb[src[e], :] as a one-hot matmul on the MXU.
    # bf16 one-hot is exact for {0, 1}; emb is bf16, so every vs_k entry is an
    # exact bf16 embedding value (single-term f32 accumulation).
    # TODO(synk): cache vs_k (and gather_oh) across output-row tiles when
    # M_pad // TM > 1 to avoid recomputing the gather matmul per row tile.
    col_ids = lax.broadcasted_iota(jnp.int32, (TE, N_pad), 1)
    gather_oh = (src[:, None] == col_ids).astype(jnp.bfloat16)       # (TE, N_pad)
    vs_k = jnp.dot(gather_oh, emb_ref[...],
                   preferred_element_type=jnp.float32)               # (TE, H_pad)

    # Scatter-add vs_k rows into their destination rows of this output tile.
    row_ids = lax.broadcasted_iota(jnp.int32, (TM, TE), 0) + i * TM
    scatter_oh = dst[None, :] == row_ids                             # (TM, TE) bool
    acc_ref[...] += jnp.dot(scatter_oh.astype(jnp.bfloat16),
                            vs_k.astype(jnp.bfloat16),               # lossless cast
                            preferred_element_type=jnp.float32)
    # Exact f32 per-row edge counts (XLU row reduction; hides under the MXU).
    cnt_ref[...] += jnp.sum(scatter_oh.astype(jnp.float32),
                            axis=1, keepdims=True)

    @pl.when(k == pl.num_programs(1) - 1)
    def _():
        # Exact divide: runs once per output tile, cost negligible.
        out_ref[...] = acc_ref[...] / jnp.maximum(cnt_ref[...], 1.0)


def _vmem_footprint_bytes(TM, TE, N_pad, H_pad):
    """Rough upper bound on VMEM use: pipeline buffers + scratch + temporaries."""
    bf16, f32, i32 = 2, 4, 4
    pipeline = (
        2 * N_pad * H_pad * bf16          # emb table block (double-buffered)
        + 2 * TM * H_pad * f32            # output tile (double-buffered)
        + 2 * 2 * TE * i32                # src + dst id streams (double-buffered)
    )
    scratch = TM * H_pad * f32 + TM * 128 * f32       # acc + cnt (lane-padded)
    temps = (
        TE * N_pad * (i32 + bf16)         # col iota + gather one-hot
        + TM * TE * (i32 + bf16)          # row iota + scatter one-hot
        + TE * H_pad * (f32 + bf16)       # vs_k (f32) + its bf16 copy
    )
    return pipeline + scratch + temps


def isne_forward(emb_table, node_ids, edge_index, num_out,
                 *, edge_tile=512, out_tile=256):
    """emb_table : (num_nodes, hidden) float
       node_ids  : (B,) int32
       edge_index: (2, E) int32
       num_out   : static python int = max(edge_index[1]) + 1 (scatter_mean default)
    """
    N, H = emb_table.shape
    E = edge_index.shape[1]

    # glue: sources = node_ids[edge_index[0]]  (cheap index arithmetic in JAX)
    sources = jnp.take(node_ids, edge_index[0]).astype(jnp.int32)      # (E,)
    dst = edge_index[1].astype(jnp.int32)                              # (E,)

    # --- padding to lane-dense / MXU-friendly shapes -------------------------
    TE = edge_tile
    E_pad = _round_up(max(E, 1), TE)
    N_pad = _round_up(N, 128)
    H_pad = _round_up(H, 128)              # no +1 count column anymore
    # Out tile: fill the MXU M dim (256) but never exceed the padded output.
    # TODO(synk): on v7x with tiny num_out (a single row tile) the second
    # TensorCore idles; split the edge reduction across cores with partial
    # accumulators + a small combine step.
    TM = min(out_tile, _round_up(num_out, 8))
    M_pad = _round_up(num_out, TM)

    # Padded edges: src -> 0 (any valid row), dst -> -1 (matches no output row,
    # so they contribute nothing to sums or counts).
    src_p = jnp.zeros((1, E_pad), jnp.int32).at[0, :E].set(sources)
    dst_p = jnp.full((1, E_pad), -1, jnp.int32).at[0, :E].set(dst)

    # bf16 table: explicit choice (the default TPU dot precision truncates the
    # operands to bf16 anyway) and halves the table's VMEM residency.
    emb_p = jnp.zeros((N_pad, H_pad), jnp.bfloat16)
    emb_p = emb_p.at[:N, :H].set(emb_table.astype(jnp.bfloat16))

    # --- per-generation VMEM budget -------------------------------------------
    try:
        vmem_physical = int(pltpu.get_tpu_info().vmem_capacity_bytes)
    except Exception:
        vmem_physical = 64 * 1024 * 1024          # most conservative (v7x)
    vmem_cap = (vmem_physical * 3) // 4           # ~96 MiB v5e/v6e, ~48 MiB v7x
    need = _vmem_footprint_bytes(TM, TE, N_pad, H_pad)
    assert need <= vmem_cap, (
        f"tile config needs ~{need / 2**20:.1f} MiB VMEM but cap is "
        f"{vmem_cap / 2**20:.1f} MiB; shrink edge_tile/out_tile or tile N")
    vmem_limit = int(min(vmem_cap, max(2 * need, 16 * 1024 * 1024)))
    # TODO(synk): for very large N on v7x, single-buffer the resident table
    # (pipeline_mode=pl.Buffered(1) or a manual HBM->VMEM stage) and tile the
    # N contraction so the table no longer has to be wholly VMEM resident.

    grid = (M_pad // TM, E_pad // TE)

    out = pl.pallas_call(
        _isne_kernel,
        out_shape=jax.ShapeDtypeStruct((M_pad, H_pad), jnp.float32),
        grid=grid,
        in_specs=[
            pl.BlockSpec((1, TE), lambda i, k: (0, k)),                # src ids
            pl.BlockSpec((1, TE), lambda i, k: (0, k)),                # dst ids
            pl.BlockSpec((N_pad, H_pad), lambda i, k: (0, 0)),         # emb (resident)
        ],
        out_specs=pl.BlockSpec((TM, H_pad), lambda i, k: (i, 0)),
        scratch_shapes=[
            pltpu.VMEM((TM, H_pad), jnp.float32),                      # feature sums
            pltpu.VMEM((TM, 1), jnp.float32),                          # edge counts
        ],
        compiler_params=pltpu.CompilerParams(
            dimension_semantics=("parallel", "arbitrary"),
            vmem_limit_bytes=vmem_limit,
        ),
    )(src_p, dst_p, emb_p)

    return out[:num_out, :H]


def _reference(emb_table, node_ids, edge_index, num_out):
    sources = node_ids[edge_index[0]]
    vs = emb_table[sources]
    dst = edge_index[1]
    sums = jax.ops.segment_sum(vs, dst, num_segments=num_out)
    cnts = jax.ops.segment_sum(jnp.ones((vs.shape[0],), jnp.float32), dst,
                               num_segments=num_out)
    return sums / jnp.maximum(cnts, 1.0)[:, None]


if __name__ == "__main__":
    num_nodes = 16      # embedding rows
    hidden = 32         # embedding dim
    batch_nodes = 16    # length of node_ids
    num_edges = 1200    # pads to 1536 -> 3 edge tiles of 512 (exercises reduction)

    key = jax.random.PRNGKey(0)
    k_emb, k_nid, k_e0, k_e1 = jax.random.split(key, 4)

    # nn.Embedding default init ~ N(0, 1), deterministic here
    emb_table = jax.random.normal(k_emb, (num_nodes, hidden), dtype=jnp.float32)
    node_ids = jax.random.randint(k_nid, (batch_nodes,), 0, num_nodes, dtype=jnp.int32)
    edge_src = jax.random.randint(k_e0, (num_edges,), 0, batch_nodes, dtype=jnp.int32)
    edge_dst = jax.random.randint(k_e1, (num_edges,), 0, batch_nodes, dtype=jnp.int32)
    edge_index = jnp.stack([edge_src, edge_dst], axis=0)               # (2, E)

    # scatter_mean default output size = index.max() + 1.  Must be static for
    # the kernel; in production pass a fixed num_out to avoid this host sync.
    num_out = int(jax.device_get(edge_dst).max()) + 1

    out = isne_forward(emb_table, node_ids, edge_index, num_out)
    out = jax.block_until_ready(out)
    assert out.shape == (num_out, hidden)

    # Tight check vs a reference using the same bf16-quantized table: the
    # kernel's only approximation is the explicit f32 -> bf16 table cast.
    emb_q = emb_table.astype(jnp.bfloat16).astype(jnp.float32)
    ref_q = _reference(emb_q, node_ids, edge_index, num_out)
    assert jnp.allclose(out, ref_q, atol=1e-4, rtol=1e-4), "mismatch vs bf16-table reference"

    # Loose check vs the exact f32 module semantics (bounds the bf16 cast error).
    ref = _reference(emb_table, node_ids, edge_index, num_out)
    assert jnp.allclose(out, ref, atol=2e-2, rtol=2e-2), "mismatch vs f32 reference"

    print("KERNEL_OK")
</pallas_src>

<mosaic_0001>
module attributes {stable_mosaic.version = 11 : i64} {
  func.func @_isne_kernel(%arg0: i32, %arg1: i32, %arg2: memref<1x512xi32, #tpu.memory_space<vmem>>, %arg3: memref<1x512xi32, #tpu.memory_space<vmem>>, %arg4: memref<128x128xbf16, #tpu.memory_space<vmem>>, %arg5: memref<16x128xf32, #tpu.memory_space<vmem>>, %arg6: memref<16x128xf32, #tpu.memory_space<vmem>>, %arg7: memref<16x1xf32, #tpu.memory_space<vmem>>) attributes {dimension_semantics = [#tpu.dimension_semantics<parallel>, #tpu.dimension_semantics<arbitrary>], iteration_bounds = array<i64: 1, 3>, scalar_prefetch = 0 : i64, scratch_operands = 2 : i64, tpu.core_type = #tpu.core_type<tc>, window_params = [{transform_indices = @transform_0, window_bounds = array<i64: 1, 512>}, {transform_indices = @transform_1, window_bounds = array<i64: 1, 512>}, {pipeline_mode = #tpu.pipeline_mode<synchronous>, transform_indices = @transform_2, window_bounds = array<i64: 128, 128>}, {transform_indices = @transform_3, window_bounds = array<i64: 16, 128>}]} {
    %c0_i32 = arith.constant 0 : i32
    %0 = arith.cmpi eq, %arg1, %c0_i32 : i32
    %1 = arith.extui %0 : i1 to i32
    %c0_i32_0 = arith.constant 0 : i32
    %2 = arith.cmpi ne, %1, %c0_i32_0 : i32
    scf.if %2 {
      %cst_17 = arith.constant 0.000000e+00 : f32
      %41 = vector.broadcast %cst_17 : f32 to vector<16x128xf32>
      %c0_18 = arith.constant 0 : index
      %c0_19 = arith.constant 0 : index
      %42 = vector.load %arg6[%c0_18, %c0_19] : memref<16x128xf32, #tpu.memory_space<vmem>>, vector<16x128xf32>
      tpu.vector_store %arg6[%c0_18, %c0_19], %41 {strides = array<i32>} : memref<16x128xf32, #tpu.memory_space<vmem>>, vector<16x128xf32>,
      %cst_20 = arith.constant 0.000000e+00 : f32
      %43 = vector.broadcast %cst_20 : f32 to vector<16x1xf32>
      %c0_21 = arith.constant 0 : index
      %c0_22 = arith.constant 0 : index
      %44 = vector.load %arg7[%c0_21, %c0_22] : memref<16x1xf32, #tpu.memory_space<vmem>>, vector<16x1xf32>
      tpu.vector_store %arg7[%c0_21, %c0_22], %43 {strides = array<i32>} : memref<16x1xf32, #tpu.memory_space<vmem>>, vector<16x1xf32>,
    } else {
    }
    %c0 = arith.constant 0 : index
    %c0_1 = arith.constant 0 : index
    %3 = vector.load %arg2[%c0, %c0_1] : memref<1x512xi32, #tpu.memory_space<vmem>>, vector<1x512xi32>
    %4 = vector.shape_cast %3 : vector<1x512xi32> to vector<512xi32>
    %c0_2 = arith.constant 0 : index
    %c0_3 = arith.constant 0 : index
    %5 = vector.load %arg3[%c0_2, %c0_3] : memref<1x512xi32, #tpu.memory_space<vmem>>, vector<1x512xi32>
    %6 = vector.shape_cast %5 : vector<1x512xi32> to vector<512xi32>
    %7 = tpu.iota {dimensions = array<i32: 1>} : vector<512x128xi32>
    %8 = vector.shape_cast %4 : vector<512xi32> to vector<512x1xi32>
    %9 = vector.broadcast %8 : vector<512x1xi32> to vector<512x128xi32>
    %10 = arith.cmpi eq, %9, %7 : vector<512x128xi32>
    %11 = arith.extui %10 : vector<512x128xi1> to vector<512x128xi32>
    %12 = arith.sitofp %11 : vector<512x128xi32> to vector<512x128xf32>
    %13 = arith.truncf %12 : vector<512x128xf32> to vector<512x128xbf16>
    %c0_4 = arith.constant 0 : index
    %c0_5 = arith.constant 0 : index
    %14 = vector.load %arg4[%c0_4, %c0_5] : memref<128x128xbf16, #tpu.memory_space<vmem>>, vector<128x128xbf16>
    %cst = arith.constant dense<0.000000e+00> : vector<512x128xf32>
    %15 = tpu.matmul %13, %14, %cst {dimension_numbers = #tpu.dot_dimension_numbers<[1], [0], [0], [1], [0, 0, 1, 1], [], []>} : vector<512x128xbf16>, vector<128x128xbf16>, vector<512x128xf32> -> vector<512x128xf32>
    %16 = tpu.iota {dimensions = array<i32: 0>} : vector<16x512xi32>
    %c16_i32 = arith.constant 16 : i32
    %17 = arith.muli %arg0, %c16_i32 : i32
    %18 = vector.broadcast %17 : i32 to vector<16x512xi32>
    %19 = arith.addi %16, %18 : vector<16x512xi32>
    %20 = vector.shape_cast %6 : vector<512xi32> to vector<1x512xi32>
    %21 = vector.broadcast %20 : vector<1x512xi32> to vector<16x512xi32>
    %22 = arith.cmpi eq, %21, %19 : vector<16x512xi32>
    %c0_6 = arith.constant 0 : index
    %c0_7 = arith.constant 0 : index
    %23 = vector.load %arg6[%c0_6, %c0_7] : memref<16x128xf32, #tpu.memory_space<vmem>>, vector<16x128xf32>
    %24 = arith.extui %22 : vector<16x512xi1> to vector<16x512xi32>
    %25 = arith.sitofp %24 : vector<16x512xi32> to vector<16x512xf32>
    %26 = arith.truncf %25 : vector<16x512xf32> to vector<16x512xbf16>
    %27 = arith.truncf %15 : vector<512x128xf32> to vector<512x128xbf16>
    %cst_8 = arith.constant dense<0.000000e+00> : vector<16x128xf32>
    %28 = tpu.matmul %26, %27, %cst_8 {dimension_numbers = #tpu.dot_dimension_numbers<[1], [0], [0], [1], [0, 0, 1, 1], [], []>} : vector<16x512xbf16>, vector<512x128xbf16>, vector<16x128xf32> -> vector<16x128xf32>
    %29 = arith.addf %23, %28 : vector<16x128xf32>
    %c0_9 = arith.constant 0 : index
    %c0_10 = arith.constant 0 : index
    %30 = vector.load %arg6[%c0_9, %c0_10] : memref<16x128xf32, #tpu.memory_space<vmem>>, vector<16x128xf32>
    tpu.vector_store %arg6[%c0_9, %c0_10], %29 {strides = array<i32>} : memref<16x128xf32, #tpu.memory_space<vmem>>, vector<16x128xf32>,
    %c0_11 = arith.constant 0 : index
    %c0_12 = arith.constant 0 : index
    %31 = vector.load %arg7[%c0_11, %c0_12] : memref<16x1xf32, #tpu.memory_space<vmem>>, vector<16x1xf32>
    %32 = arith.extui %22 : vector<16x512xi1> to vector<16x512xi32>
    %33 = arith.sitofp %32 : vector<16x512xi32> to vector<16x512xf32>
    %cst_13 = arith.constant dense<0.000000e+00> : vector<16xf32>
    %34 = vector.multi_reduction <add>, %33, %cst_13 [1] : vector<16x512xf32> to vector<16xf32>
    %35 = vector.shape_cast %34 : vector<16xf32> to vector<16x1xf32>
    %36 = arith.addf %31, %35 : vector<16x1xf32>
    %c0_14 = arith.constant 0 : index
    %c0_15 = arith.constant 0 : index
    %37 = vector.load %arg7[%c0_14, %c0_15] : memref<16x1xf32, #tpu.memory_space<vmem>>, vector<16x1xf32>
    tpu.vector_store %arg7[%c0_14, %c0_15], %36 {strides = array<i32>} : memref<16x1xf32, #tpu.memory_space<vmem>>, vector<16x1xf32>,
    %c2_i32 = arith.constant 2 : i32
    %38 = arith.cmpi eq, %arg1, %c2_i32 : i32
    %39 = arith.extui %38 : i1 to i32
    %c0_i32_16 = arith.constant 0 : i32
    %40 = arith.cmpi ne, %39, %c0_i32_16 : i32
    scf.if %40 {
      %c0_17 = arith.constant 0 : index
      %c0_18 = arith.constant 0 : index
      %41 = vector.load %arg6[%c0_17, %c0_18] : memref<16x128xf32, #tpu.memory_space<vmem>>, vector<16x128xf32>
      %c0_19 = arith.constant 0 : index
      %c0_20 = arith.constant 0 : index
      %42 = vector.load %arg7[%c0_19, %c0_20] : memref<16x1xf32, #tpu.memory_space<vmem>>, vector<16x1xf32>
      %cst_21 = arith.constant 1.000000e+00 : f32
      %43 = vector.broadcast %cst_21 : f32 to vector<16x1xf32>
      %44 = arith.maximumf %42, %43 : vector<16x1xf32>
      %45 = vector.broadcast %44 : vector<16x1xf32> to vector<16x128xf32>
      %46 = arith.divf %41, %45 : vector<16x128xf32>
      %c0_22 = arith.constant 0 : index
      %c0_23 = arith.constant 0 : index
      %47 = vector.load %arg5[%c0_22, %c0_23] : memref<16x128xf32, #tpu.memory_space<vmem>>, vector<16x128xf32>
      tpu.vector_store %arg5[%c0_22, %c0_23], %46 {strides = array<i32>} : memref<16x128xf32, #tpu.memory_space<vmem>>, vector<16x128xf32>,
    } else {
    }
    return
  }
  func.func @transform_0(%arg0: i32, %arg1: i32) -> (i32, i32) {
    %c0_i32 = arith.constant 0 : i32
    %c0_i32_0 = arith.constant 0 : i32
    return %c0_i32, %arg1 : i32, i32
  }
  func.func @transform_1(%arg0: i32, %arg1: i32) -> (i32, i32) {
    %c0_i32 = arith.constant 0 : i32
    %c0_i32_0 = arith.constant 0 : i32
    return %c0_i32, %arg1 : i32, i32
  }
  func.func @transform_2(%arg0: i32, %arg1: i32) -> (i32, i32) {
    %c0_i32 = arith.constant 0 : i32
    %c0_i32_0 = arith.constant 0 : i32
    %c0_i32_1 = arith.constant 0 : i32
    return %c0_i32, %c0_i32_0 : i32, i32
  }
  func.func @transform_3(%arg0: i32, %arg1: i32) -> (i32, i32) {
    %c0_i32 = arith.constant 0 : i32
    %c0_i32_0 = arith.constant 0 : i32
    return %arg0, %c0_i32 : i32, i32
  }
}

</mosaic_0001>

<llo_original>
// kernel: tpu_custom_call.1
$region0: #{tpu_custom_call.1}
  #allocation0 [shape = 'u32[]', space=smem, size = 0x4, offset = 0x4, fixed_abs, tag = 'smem constant byte address 0x4 - core index']
  #allocation1 [shape = 'u32[72,128]{1,0:T(1,128)}', space=vmem, size = 0x9000, scoped, tag = 'internal scratch']
  #allocation2 [shape = 'f32[16,128]{1,0:T(8,128)}', space=vmem, size = 0x2000, scoped, tag = 'scratch operand']
  #allocation3 [shape = 'f32[16,1]{1,0:T(8,128)}', space=vmem, size = 0x2000, scoped, tag = 'scratch operand']
  %s0 = inlined_call_operand.hbm [shape: s32[1,1536], index: 0, kind: input, shape index: {}]
  %s1 = inlined_call_operand.hbm [shape: s32[1,1536], index: 1, kind: input, shape index: {}]
  %s2 = inlined_call_operand.hbm [shape: bf16[128,128], index: 2, kind: input, shape index: {}]
  %s3 = inlined_call_operand.hbm [shape: f32[16,128], index: 3, kind: output, shape index: {}]
  %s4 = sld [smem:[#allocation0]]
  $region65: #{tpu_custom_call.1} parent=0
    _
  %s6 = ssub.s32 1, %s4
  %s7 = scalar_select 0, %s6, %s4
  $region1: #{tpu_custom_call.1} parent=0
    #allocation4 [shape = 'u8[4096]{0}', space=vmem, size = 0x1000, scoped, tag = 'input window, operand 0']
    #allocation5 [shape = 's32[2]{0}', space=sflag, size = 0x8, scoped, tag = 'scoped memory for tpu_custom_call.1']
    #allocation6 [shape = 's32[2]{0}', space=sflag, size = 0x8, scoped, tag = 'scoped memory for tpu_custom_call.1']
    #allocation7 [shape = 'u8[4096]{0}', space=vmem, size = 0x1000, scoped, tag = 'input window, operand 1']
    #allocation8 [shape = 's32[2]{0}', space=sflag, size = 0x8, scoped, tag = 'scoped memory for tpu_custom_call.1']
    #allocation9 [shape = 'u8[32768]{0}', space=vmem, size = 0x8000, scoped, tag = 'input window, operand 2, single buffered']
    #allocation10 [shape = 'u8[8192]{0}', space=vmem, size = 0x2000, scoped, tag = 'output window, operand 0, single buffered']
    %8 = vsyncpa [#allocation5], 0
    %s9 = scalar_lea.sflag [#allocation5], 1
    %10 = vsyncpa %s9, 0
    %11 = vsyncpa [#allocation8], 0
    %s12 = scalar_lea.sflag [#allocation8], 1
    %13 = vsyncpa %s12, 0
    %14 = vsyncpa [#allocation6], 0
    loop: start=0, step=1, limit=5
    $region2: #{tpu_custom_call.1} parent=1 // loop_pre_header
      _
    $region3: #{tpu_custom_call.1} parent=1 // loop_header
      %s16 = sphi 0, %s20
      %p17 = scmp.ge.s32.totalorder %s16, 5
      %s23 = sphi 0, %s35
      %s24 = sphi 0, %s31
      %s25 = sphi 0, %s23
      %s26 = sphi 0, %s24
      %s27 = sphi 0, %s25
      %s28 = sphi 0, %s26
      %s38 = sphi 0, %s40
      %s41 = sphi 0, %s38
      %s42 = sphi 0, %s41
      %s58 = sphi 0, %s42
      %s64 = sphi 0, %s66
      %s67 = sphi 0, %s64
      %s68 = sphi 0, %s67
      %s84 = sphi 0, %s68
      %s88 = sphi 0, %s88
      %s90 = sphi 0, %s88
      %s91 = sphi 0, %s90
      %s105 = sphi 0, %s91
      %s111 = sphi 0, %s113
      %s114 = sphi 0, %s111
      %s115 = sphi 0, %s114
      %s131 = sphi 0, %s115
    $region4: #{tpu_custom_call.1} parent=1 // loop_header_branch
      %19 = sbr.rel (%p17) target = $region8
    $region5: #{tpu_custom_call.1} parent=1 // loop_body
      %s21 = ssub.s32 %s16, 1
      %s22 = ssub.s32 %s16, 2
      %s29 = sadd.s32 1, %s24
      %p30 = scmp.ge.s32.totalorder %s29, 3
      %s31 = scalar_select %p30, 0, %s29
      %s32 = sadd.s32 1, %s23
      %s33 = scalar_select %p30, %s32, %s23
      %p34 = scmp.ge.s32.totalorder %s33, 1
      %s35 = scalar_select %p34, 0, %s33
      %s36 = ssub.s32 %s24, %s31
      %p37 = scmp.eq.s32.totalorder %s36, 0
      %s39 = sadd.s32 %s38, 1
      %s40 = scalar_select %p37, %s38, %s39
      %p43 = pneg %p37
      %p44 = scmp.eq.s32.totalorder %s16, 2
      %p45 = por %p43, %p44
      %p46 = scmp.ne.s32.totalorder %s38, %s41
      %p47 = scmp.eq.s32.totalorder %s16, 0
      %p48 = por %p46, %p47
      %p49 = scmp.ne.s32.totalorder %s38, %s41
      %p50 = scmp.eq.s32.totalorder %s21, 2
      %p51 = por %p49, %p50
      %p52 = scmp.ne.s32.totalorder %s41, %s42
      %p53 = scmp.eq.s32.totalorder %s21, 0
      %p54 = por %p52, %p53
      %p55 = scmp.ne.s32.totalorder %s41, %s42
      %p56 = scmp.eq.s32.totalorder %s22, 2
      %p57 = por %p55, %p56
      %p59 = scmp.ne.s32.totalorder %s42, %s58
      %p60 = scmp.eq.s32.totalorder %s22, 0
      %p61 = por %p59, %p60
      %s62 = ssub.s32 %s24, %s31
      %p63 = scmp.eq.s32.totalorder %s62, 0
      %s65 = sadd.s32 %s64, 1
      %s66 = scalar_select %p63, %s64, %s65
      %p69 = pneg %p63
      %p70 = scmp.eq.s32.totalorder %s16, 2
      %p71 = por %p69, %p70
      %p72 = scmp.ne.s32.totalorder %s64, %s67
      %p73 = scmp.eq.s32.totalorder %s16, 0
      %p74 = por %p72, %p73
      %p75 = scmp.ne.s32.totalorder %s64, %s67
      %p76 = scmp.eq.s32.totalorder %s21, 2
      %p77 = por %p75, %p76
      %p78 = scmp.ne.s32.totalorder %s67, %s68
      %p79 = scmp.eq.s32.totalorder %s21, 0
      %p80 = por %p78, %p79
      %p81 = scmp.ne.s32.totalorder %s67, %s68
      %p82 = scmp.eq.s32.totalorder %s22, 2
      %p83 = por %p81, %p82
      %p85 = scmp.ne.s32.totalorder %s68, %s84
      %p86 = scmp.eq.s32.totalorder %s22, 0
      %p87 = por %p85, %p86
      %s89 = sadd.s32 %s88, 1
      %p92 = scmp.eq.s32.totalorder %s16, 2
      %p93 = scmp.ne.s32.totalorder %s88, %s90
      %p94 = scmp.eq.s32.totalorder %s16, 0
      %p95 = por %p93, %p94
      %p96 = scmp.ne.s32.totalorder %s88, %s90
      %p97 = scmp.eq.s32.totalorder %s21, 2
      %p98 = por %p96, %p97
      %p99 = scmp.ne.s32.totalorder %s90, %s91
      %p100 = scmp.eq.s32.totalorder %s21, 0
      %p101 = por %p99, %p100
      %p102 = scmp.ne.s32.totalorder %s90, %s91
      %p103 = scmp.eq.s32.totalorder %s22, 2
      %p104 = por %p102, %p103
      %p106 = scmp.ne.s32.totalorder %s91, %s105
      %p107 = scmp.eq.s32.totalorder %s22, 0
      %p108 = por %p106, %p107
      %s109 = ssub.s32 %s23, %s35
      %p110 = scmp.eq.s32.totalorder %s109, 0
      %s112 = sadd.s32 %s111, 1
      %s113 = scalar_select %p110, %s111, %s112
      %p116 = pneg %p110
      %p117 = scmp.eq.s32.totalorder %s16, 2
      %p118 = por %p116, %p117
      %p119 = scmp.ne.s32.totalorder %s111, %s114
      %p120 = scmp.eq.s32.totalorder %s16, 0
      %p121 = por %p119, %p120
      %p122 = scmp.ne.s32.totalorder %s111, %s114
      %p123 = scmp.eq.s32.totalorder %s21, 2
      %p124 = por %p122, %p123
      %p125 = scmp.ne.s32.totalorder %s114, %s115
      %p126 = scmp.eq.s32.totalorder %s21, 0
      %p127 = por %p125, %p126
      %p128 = scmp.ne.s32.totalorder %s114, %s115
      %p129 = scmp.eq.s32.totalorder %s22, 2
      %p130 = por %p128, %p129
      %p132 = scmp.ne.s32.totalorder %s115, %s131
      %p133 = scmp.eq.s32.totalorder %s22, 0
      %p134 = por %p132, %p133
      %p135 = scmp.le.s32.totalorder 1, %s16
      %p136 = scmp.lt.s32.totalorder %s16, 4
      %p137 = pnand %p135, %p136
      %p138 = pneg %p137
      // Predicated region
      $region9: #{tpu_custom_call.1} parent=5 // pred_check
        _
      $region10: #{tpu_custom_call.1} parent=5 // pred_check_branch
        %140 = sbr.rel (%p137) target = $region12
      $region11: #{tpu_custom_call.1} parent=5 // pred_region
        %s141 = ssub.s32 %s16, 1
        // Predicated region
        $region13: #{tpu_custom_call.1} parent=11 // pred_check
          %p142 = pneg %p101
        $region14: #{tpu_custom_call.1} parent=11 // pred_check_branch
          %144 = sbr.rel (%p142) target = $region16
        $region15: #{tpu_custom_call.1} parent=11 // pred_region
          %146 = vsyncadd [#allocation8], 0
          %s147 = sshll.u32 %s2, 4
          %s148 = int_to_ptr.hbm [resolvable:$true] %s147
          %s149 = sshll.u32 [#allocation9], 4
          %s150 = int_to_ptr.vmem [resolvable:$true] %s149
          %155 = dma.hbm_to_vmem [thread:$0]  %s148, 1024, %s150, [#allocation8], 64, 64, 4
        $region16: #{tpu_custom_call.1} parent=11 // pred_fallthru
          _
      $region12: #{tpu_custom_call.1} parent=5 // pred_fallthru
        _
      %p156 = scmp.lt.s32.totalorder %s16, 3
      // Predicated region
      $region17: #{tpu_custom_call.1} parent=5 // pred_check
        %p157 = pneg %p156
      $region18: #{tpu_custom_call.1} parent=5 // pred_check_branch
        %159 = sbr.rel (%p157) target = $region20
      $region19: #{tpu_custom_call.1} parent=5 // pred_region
        // Predicated region
        $region21: #{tpu_custom_call.1} parent=19 // pred_check
          %p160 = pneg %p48
        $region22: #{tpu_custom_call.1} parent=19 // pred_check_branch
          %162 = sbr.rel (%p160) target = $region24
        $region23: #{tpu_custom_call.1} parent=19 // pred_region
          %s163 = sand.u32 %s38, 1
          %s164 = scalar_lea.sflag [#allocation5], %s163
          %s165 = sand.u32 %s38, 1
          %s166 = smul.addr %s165, 4
          %s167 = scalar_lea.vmem [#allocation4], %s166
          %s168 = smul.u32 4, %s24
          %170 = vsyncadd %s164, 0
          %s171 = scalar_lea.hbm %s0, %s168
          %s173 = sshll.u32 %s171, 4
          %s174 = int_to_ptr.hbm [resolvable:$true] %s173
          %s175 = sshll.u32 %s167, 4
          %s176 = int_to_ptr.vmem [resolvable:$true] %s175
          %178 = dma.hbm_to_vmem [thread:$0]  %s174, 64, %s176, %s164
        $region24: #{tpu_custom_call.1} parent=19 // pred_fallthru
          _
        // Predicated region
        $region25: #{tpu_custom_call.1} parent=19 // pred_check
          %p179 = pneg %p74
        $region26: #{tpu_custom_call.1} parent=19 // pred_check_branch
          %181 = sbr.rel (%p179) target = $region28
        $region27: #{tpu_custom_call.1} parent=19 // pred_region
          %s182 = sand.u32 %s16, 1
          %s183 = scalar_lea.sflag [#allocation8], %s182
          %s184 = sand.u32 %s64, 1
          %s185 = smul.addr %s184, 4
          %s186 = scalar_lea.vmem [#allocation7], %s185
          %s187 = smul.u32 4, %s24
          %189 = vsyncadd %s183, 0
          %s190 = scalar_lea.hbm %s1, %s187
          %s192 = sshll.u32 %s190, 4
          %s193 = int_to_ptr.hbm [resolvable:$true] %s192
          %s194 = sshll.u32 %s186, 4
          %s195 = int_to_ptr.vmem [resolvable:$true] %s194
          %197 = dma.hbm_to_vmem [thread:$0]  %s193, 64, %s195, %s183
        $region28: #{tpu_custom_call.1} parent=19 // pred_fallthru
          _
      $region20: #{tpu_custom_call.1} parent=5 // pred_fallthru
        _
      %p198 = scmp.le.s32.totalorder 1, %s16
      %p199 = scmp.lt.s32.totalorder %s16, 4
      %p200 = pnand %p198, %p199
      %p201 = pneg %p200
      // Predicated region
      $region29: #{tpu_custom_call.1} parent=5 // pred_check
        _
      $region30: #{tpu_custom_call.1} parent=5 // pred_check_branch
        %203 = sbr.rel (%p200) target = $region32
      $region31: #{tpu_custom_call.1} parent=5 // pred_region
        %s204 = ssub.s32 %s16, 1
        %s205 = sand.u32 %s41, 1
        %s206 = scalar_lea.sflag [#allocation5], %s205
        %s207 = sand.u32 %s41, 1
        %s208 = smul.addr %s207, 4
        %s209 = scalar_lea.vmem [#allocation4], %s208
        // Predicated region
        $region33: #{tpu_custom_call.1} parent=31 // pred_check
          %p210 = pneg %p54
        $region34: #{tpu_custom_call.1} parent=31 // pred_check_branch
          %212 = sbr.rel (%p210) target = $region36
        $region35: #{tpu_custom_call.1} parent=31 // pred_region
          %214 = dma.done %s206, 64
        $region36: #{tpu_custom_call.1} parent=31 // pred_fallthru
          _
        %s215 = sand.u32 %s21, 1
        %s216 = scalar_lea.sflag [#allocation8], %s215
        %s217 = sand.u32 %s67, 1
        %s218 = smul.addr %s217, 4
        %s219 = scalar_lea.vmem [#allocation7], %s218
        // Predicated region
        $region37: #{tpu_custom_call.1} parent=31 // pred_check
          %p220 = pneg %p80
        $region38: #{tpu_custom_call.1} parent=31 // pred_check_branch
          %222 = sbr.rel (%p220) target = $region40
        $region39: #{tpu_custom_call.1} parent=31 // pred_region
          %224 = dma.done %s216, 64
        $region40: #{tpu_custom_call.1} parent=31 // pred_fallthru
          _
        // Predicated region
        $region41: #{tpu_custom_call.1} parent=31 // pred_check
          %p225 = pneg %p101
        $region42: #{tpu_custom_call.1} parent=31 // pred_check_branch
          %227 = sbr.rel (%p225) target = $region44
        $region43: #{tpu_custom_call.1} parent=31 // pred_region
          %229 = dma.done [#allocation8], 1024
        $region44: #{tpu_custom_call.1} parent=31 // pred_fallthru
          _
        %s230 = sand.u32 %s41, 1
        %s231 = scalar_lea.sflag [#allocation5], %s230
        %s232 = sand.u32 %s41, 1
        %s233 = smul.addr %s232, 4
        %s234 = scalar_lea.vmem [#allocation4], %s233
        %p235 = pneg %p54
        %p236 = pneg %p51
        %s237 = sand.u32 %s21, 1
        %s238 = scalar_lea.sflag [#allocation8], %s237
        %s239 = sand.u32 %s67, 1
        %s240 = smul.addr %s239, 4
        %s241 = scalar_lea.vmem [#allocation7], %s240
        %p242 = pneg %p80
        %p243 = pneg %p77
        %p244 = pneg %p101
        %p245 = pneg %p98
        %p246 = pneg %p127
        %p247 = pneg %p124
        %s248 = smul.u32 4, %s26
        %s249 = smul.u32 4, %s26
        %s250 = smul.u32 2, %s25
        %p251 = scmp.eq.s32.totalorder %s26, 0
        // Predicated region
        $region45: #{tpu_custom_call.1} parent=31 // pred_check
          %p252 = pneg %p251
        $region46: #{tpu_custom_call.1} parent=31 // pred_check_branch
          %254 = sbr.rel (%p252) target = $region48
        $region47: #{tpu_custom_call.1} parent=31 // pred_region
          %255 = vst [vmem:[#allocation2] sm:$0xff] 0.0
          %256 = vst [vmem:[#allocation2 + $0x8] sm:$0xff] 0.0
          %vm257 = vcmask 7168
          %258 = vst.msk [vmem:[#allocation3] sm:$0xff] %vm257, 0.0
          %259 = vst.msk [vmem:[#allocation3 + $0x8] sm:$0xff] %vm257, 0.0
        $region48: #{tpu_custom_call.1} parent=31 // pred_fallthru
          _
        %v260 = vld [vmem:[%s209] sm:$0xf]
        %v261 = vld [vmem:[%s219] sm:$0xf]
        %v262 = vlaneseq
        %v263 = vand.u32 %v262, 127
        %v264 = vperm.slane %v260, 0
        %v265 = vperm.slane %v260, 1
        %v266 = vperm.slane %v260, 2
        %v267 = vperm.slane %v260, 3
        %v268 = vperm.slane %v264, 0
        %v269 = vlaneseq
        %v270 = vshrl.u32 %v269, 7
        %272 = vset.pattern.permute.xlu0 %v270
        %273 = vperm.xlu0 %272, %v268
        %v274 = vpop.permute.xlu0 %273
        %v275 = vlaneseq
        %v276 = vshrl.u32 %v275, 7
        %v277 = vadd.s32 %v276, 8
        %278 = vset.pattern.permute.xlu0 %v277
        %279 = vperm.xlu0 %278, %v268
        %v280 = vpop.permute.xlu0 %279
        %v281 = vlaneseq
        %v282 = vshrl.u32 %v281, 7
        %v283 = vadd.s32 %v282, 16
        %284 = vset.pattern.permute.xlu0 %v283
        %285 = vperm.xlu0 %284, %v268
        %v286 = vpop.permute.xlu0 %285
        %v287 = vlaneseq
        %v288 = vshrl.u32 %v287, 7
        %v289 = vadd.s32 %v288, 24
        %290 = vset.pattern.permute.xlu0 %v289
        %291 = vperm.xlu0 %290, %v268
        %v292 = vpop.permute.xlu0 %291
        %v293 = vlaneseq
        %v294 = vshrl.u32 %v293, 7
        %v295 = vadd.s32 %v294, 32
        %296 = vset.pattern.permute.xlu0 %v295
        %297 = vperm.xlu0 %296, %v268
        %v298 = vpop.permute.xlu0 %297
        %v299 = vlaneseq
        %v300 = vshrl.u32 %v299, 7
        %v301 = vadd.s32 %v300, 40
        %302 = vset.pattern.permute.xlu0 %v301
        %303 = vperm.xlu0 %302, %v268
        %v304 = vpop.permute.xlu0 %303
        %v305 = vlaneseq
        %v306 = vshrl.u32 %v305, 7
        %v307 = vadd.s32 %v306, 48
        %308 = vset.pattern.permute.xlu0 %v307
        %309 = vperm.xlu0 %308, %v268
        %v310 = vpop.permute.xlu0 %309
        %v311 = vlaneseq
        %v312 = vshrl.u32 %v311, 7
        %v313 = vadd.s32 %v312, 56
        %314 = vset.pattern.permute.xlu0 %v313
        %315 = vperm.xlu0 %314, %v268
        %v316 = vpop.permute.xlu0 %315
        %v317 = vlaneseq
        %v318 = vshrl.u32 %v317, 7
        %v319 = vadd.s32 %v318, 64
        %320 = vset.pattern.permute.xlu0 %v319
        %321 = vperm.xlu0 %320, %v268
        %v322 = vpop.permute.xlu0 %321
        %v323 = vlaneseq
        %v324 = vshrl.u32 %v323, 7
        %v325 = vadd.s32 %v324, 72
        %326 = vset.pattern.permute.xlu0 %v325
        %327 = vperm.xlu0 %326, %v268
        %v328 = vpop.permute.xlu0 %327
        %v329 = vlaneseq
        %v330 = vshrl.u32 %v329, 7
        %v331 = vadd.s32 %v330, 80
        %332 = vset.pattern.permute.xlu0 %v331
        %333 = vperm.xlu0 %332, %v268
        %v334 = vpop.permute.xlu0 %333
        %v335 = vlaneseq
        %v336 = vshrl.u32 %v335, 7
        %v337 = vadd.s32 %v336, 88
        %338 = vset.pattern.permute.xlu0 %v337
        %339 = vperm.xlu0 %338, %v268
        %v340 = vpop.permute.xlu0 %339
        %v341 = vlaneseq
        %v342 = vshrl.u32 %v341, 7
        %v343 = vadd.s32 %v342, 96
        %344 = vset.pattern.permute.xlu0 %v343
        %345 = vperm.xlu0 %344, %v268
        %v346 = vpop.permute.xlu0 %345
        %v347 = vlaneseq
        %v348 = vshrl.u32 %v347, 7
        %v349 = vadd.s32 %v348, 104
        %350 = vset.pattern.permute.xlu0 %v349
        %351 = vperm.xlu0 %350, %v268
        %v352 = vpop.permute.xlu0 %351
        %v353 = vlaneseq
        %v354 = vshrl.u32 %v353, 7
        %v355 = vadd.s32 %v354, 112
        %356 = vset.pattern.permute.xlu0 %v355
        %357 = vperm.xlu0 %356, %v268
        %v358 = vpop.permute.xlu0 %357
        %v359 = vlaneseq
        %v360 = vshrl.u32 %v359, 7
        %v361 = vadd.s32 %v360, 120
        %362 = vset.pattern.permute.xlu0 %v361
        %363 = vperm.xlu0 %362, %v268
        %v364 = vpop.permute.xlu0 %363
        %v365 = vperm.slane %v265, 0
        %v366 = vlaneseq
        %v367 = vshrl.u32 %v366, 7
        %369 = vset.pattern.permute.xlu0 %v367
        %370 = vperm.xlu0 %369, %v365
        %v371 = vpop.permute.xlu0 %370
        %v372 = vlaneseq
        %v373 = vshrl.u32 %v372, 7
        %v374 = vadd.s32 %v373, 8
        %375 = vset.pattern.permute.xlu0 %v374
        %376 = vperm.xlu0 %375, %v365
        %v377 = vpop.permute.xlu0 %376
        %v378 = vlaneseq
        %v379 = vshrl.u32 %v378, 7
        %v380 = vadd.s32 %v379, 16
        %381 = vset.pattern.permute.xlu0 %v380
        %382 = vperm.xlu0 %381, %v365
        %v383 = vpop.permute.xlu0 %382
        %v384 = vlaneseq
        %v385 = vshrl.u32 %v384, 7
        %v386 = vadd.s32 %v385, 24
        %387 = vset.pattern.permute.xlu0 %v386
        %388 = vperm.xlu0 %387, %v365
        %v389 = vpop.permute.xlu0 %388
        %v390 = vlaneseq
        %v391 = vshrl.u32 %v390, 7
        %v392 = vadd.s32 %v391, 32
        %393 = vset.pattern.permute.xlu0 %v392
        %394 = vperm.xlu0 %393, %v365
        %v395 = vpop.permute.xlu0 %394
        %v396 = vlaneseq
        %v397 = vshrl.u32 %v396, 7
        %v398 = vadd.s32 %v397, 40
        %399 = vset.pattern.permute.xlu0 %v398
        %400 = vperm.xlu0 %399, %v365
        %v401 = vpop.permute.xlu0 %400
        %v402 = vlaneseq
        %v403 = vshrl.u32 %v402, 7
        %v404 = vadd.s32 %v403, 48
        %405 = vset.pattern.permute.xlu0 %v404
        %406 = vperm.xlu0 %405, %v365
        %v407 = vpop.permute.xlu0 %406
        %v408 = vlaneseq
        %v409 = vshrl.u32 %v408, 7
        %v410 = vadd.s32 %v409, 56
        %411 = vset.pattern.permute.xlu0 %v410
        %412 = vperm.xlu0 %411, %v365
        %v413 = vpop.permute.xlu0 %412
        %v414 = vlaneseq
        %v415 = vshrl.u32 %v414, 7
        %v416 = vadd.s32 %v415, 64
        %417 = vset.pattern.permute.xlu0 %v416
        %418 = vperm.xlu0 %417, %v365
        %v419 = vpop.permute.xlu0 %418
        %v420 = vlaneseq
        %v421 = vshrl.u32 %v420, 7
        %v422 = vadd.s32 %v421, 72
        %423 = vset.pattern.permute.xlu0 %v422
        %424 = vperm.xlu0 %423, %v365
        %v425 = vpop.permute.xlu0 %424
        %v426 = vlaneseq
        %v427 = vshrl.u32 %v426, 7
        %v428 = vadd.s32 %v427, 80
        %429 = vset.pattern.permute.xlu0 %v428
        %430 = vperm.xlu0 %429, %v365
        %v431 = vpop.permute.xlu0 %430
        %v432 = vlaneseq
        %v433 = vshrl.u32 %v432, 7
        %v434 = vadd.s32 %v433, 88
        %435 = vset.pattern.permute.xlu0 %v434
        %436 = vperm.xlu0 %435, %v365
        %v437 = vpop.permute.xlu0 %436
        %v438 = vlaneseq
        %v439 = vshrl.u32 %v438, 7
        %v440 = vadd.s32 %v439, 96
        %441 = vset.pattern.permute.xlu0 %v440
        %442 = vperm.xlu0 %441, %v365
        %v443 = vpop.permute.xlu0 %442
        %v444 = vlaneseq
        %v445 = vshrl.u32 %v444, 7
        %v446 = vadd.s32 %v445, 104
        %447 = vset.pattern.permute.xlu0 %v446
        %448 = vperm.xlu0 %447, %v365
        %v449 = vpop.permute.xlu0 %448
        %v450 = vlaneseq
        %v451 = vshrl.u32 %v450, 7
        %v452 = vadd.s32 %v451, 112
        %453 = vset.pattern.permute.xlu0 %v452
        %454 = vperm.xlu0 %453, %v365
        %v455 = vpop.permute.xlu0 %454
        %v456 = vlaneseq
        %v457 = vshrl.u32 %v456, 7
        %v458 = vadd.s32 %v457, 120
        %459 = vset.pattern.permute.xlu0 %v458
        %460 = vperm.xlu0 %459, %v365
        %v461 = vpop.permute.xlu0 %460
        %v462 = vperm.slane %v266, 0
        %v463 = vlaneseq
        %v464 = vshrl.u32 %v463, 7
        %466 = vset.pattern.permute.xlu0 %v464
        %467 = vperm.xlu0 %466, %v462
        %v468 = vpop.permute.xlu0 %467
        %v469 = vlaneseq
        %v470 = vshrl.u32 %v469, 7
        %v471 = vadd.s32 %v470, 8
        %472 = vset.pattern.permute.xlu0 %v471
        %473 = vperm.xlu0 %472, %v462
        %v474 = vpop.permute.xlu0 %473
        %v475 = vlaneseq
        %v476 = vshrl.u32 %v475, 7
        %v477 = vadd.s32 %v476, 16
        %478 = vset.pattern.permute.xlu0 %v477
        %479 = vperm.xlu0 %478, %v462
        %v480 = vpop.permute.xlu0 %479
        %v481 = vlaneseq
        %v482 = vshrl.u32 %v481, 7
        %v483 = vadd.s32 %v482, 24
        %484 = vset.pattern.permute.xlu0 %v483
        %485 = vperm.xlu0 %484, %v462
        %v486 = vpop.permute.xlu0 %485
        %v487 = vlaneseq
        %v488 = vshrl.u32 %v487, 7
        %v489 = vadd.s32 %v488, 32
        %490 = vset.pattern.permute.xlu0 %v489
        %491 = vperm.xlu0 %490, %v462
        %v492 = vpop.permute.xlu0 %491
        %v493 = vlaneseq
        %v494 = vshrl.u32 %v493, 7
        %v495 = vadd.s32 %v494, 40
        %496 = vset.pattern.permute.xlu0 %v495
        %497 = vperm.xlu0 %496, %v462
        %v498 = vpop.permute.xlu0 %497
        %v499 = vlaneseq
        %v500 = vshrl.u32 %v499, 7
        %v501 = vadd.s32 %v500, 48
        %502 = vset.pattern.permute.xlu0 %v501
        %503 = vperm.xlu0 %502, %v462
        %v504 = vpop.permute.xlu0 %503
        %v505 = vlaneseq
        %v506 = vshrl.u32 %v505, 7
        %v507 = vadd.s32 %v506, 56
        %508 = vset.pattern.permute.xlu0 %v507
        %509 = vperm.xlu0 %508, %v462
        %v510 = vpop.permute.xlu0 %509
        %v511 = vlaneseq
        %v512 = vshrl.u32 %v511, 7
        %v513 = vadd.s32 %v512, 64
        %514 = vset.pattern.permute.xlu0 %v513
        %515 = vperm.xlu0 %514, %v462
        %v516 = vpop.permute.xlu0 %515
        %v517 = vlaneseq
        %v518 = vshrl.u32 %v517, 7
        %v519 = vadd.s32 %v518, 72
        %520 = vset.pattern.permute.xlu0 %v519
        %521 = vperm.xlu0 %520, %v462
        %v522 = vpop.permute.xlu0 %521
        %v523 = vlaneseq
        %v524 = vshrl.u32 %v523, 7
        %v525 = vadd.s32 %v524, 80
        %526 = vset.pattern.permute.xlu0 %v525
        %527 = vperm.xlu0 %526, %v462
        %v528 = vpop.permute.xlu0 %527
        %v529 = vlaneseq
        %v530 = vshrl.u32 %v529, 7
        %v531 = vadd.s32 %v530, 88
        %532 = vset.pattern.permute.xlu0 %v531
        %533 = vperm.xlu0 %532, %v462
        %v534 = vpop.permute.xlu0 %533
        %v535 = vlaneseq
        %v536 = vshrl.u32 %v535, 7
        %v537 = vadd.s32 %v536, 96
        %538 = vset.pattern.permute.xlu0 %v537
        %539 = vperm.xlu0 %538, %v462
        %v540 = vpop.permute.xlu0 %539
        %v541 = vlaneseq
        %v542 = vshrl.u32 %v541, 7
        %v543 = vadd.s32 %v542, 104
        %544 = vset.pattern.permute.xlu0 %v543
        %545 = vperm.xlu0 %544, %v462
        %v546 = vpop.permute.xlu0 %545
        %v547 = vlaneseq
        %v548 = vshrl.u32 %v547, 7
        %v549 = vadd.s32 %v548, 112
        %550 = vset.pattern.permute.xlu0 %v549
        %551 = vperm.xlu0 %550, %v462
        %v552 = vpop.permute.xlu0 %551
        %v553 = vlaneseq
        %v554 = vshrl.u32 %v553, 7
        %v555 = vadd.s32 %v554, 120
        %556 = vset.pattern.permute.xlu0 %v555
        %557 = vperm.xlu0 %556, %v462
        %v558 = vpop.permute.xlu0 %557
        %v559 = vperm.slane %v267, 0
        %v560 = vlaneseq
        %v561 = vshrl.u32 %v560, 7
        %563 = vset.pattern.permute.xlu0 %v561
        %564 = vperm.xlu0 %563, %v559
        %v565 = vpop.permute.xlu0 %564
        %v566 = vlaneseq
        %v567 = vshrl.u32 %v566, 7
        %v568 = vadd.s32 %v567, 8
        %569 = vset.pattern.permute.xlu0 %v568
        %570 = vperm.xlu0 %569, %v559
        %v571 = vpop.permute.xlu0 %570
        %v572 = vlaneseq
        %v573 = vshrl.u32 %v572, 7
        %v574 = vadd.s32 %v573, 16
        %575 = vset.pattern.permute.xlu0 %v574
        %576 = vperm.xlu0 %575, %v559
        %v577 = vpop.permute.xlu0 %576
        %v578 = vlaneseq
        %v579 = vshrl.u32 %v578, 7
        %v580 = vadd.s32 %v579, 24
        %581 = vset.pattern.permute.xlu0 %v580
        %582 = vperm.xlu0 %581, %v559
        %v583 = vpop.permute.xlu0 %582
        %v584 = vlaneseq
        %v585 = vshrl.u32 %v584, 7
        %v586 = vadd.s32 %v585, 32
        %587 = vset.pattern.permute.xlu0 %v586
        %588 = vperm.xlu0 %587, %v559
        %v589 = vpop.permute.xlu0 %588
        %v590 = vlaneseq
        %v591 = vshrl.u32 %v590, 7
        %v592 = vadd.s32 %v591, 40
        %593 = vset.pattern.permute.xlu0 %v592
        %594 = vperm.xlu0 %593, %v559
        %v595 = vpop.permute.xlu0 %594
        %v596 = vlaneseq
        %v597 = vshrl.u32 %v596, 7
        %v598 = vadd.s32 %v597, 48
        %599 = vset.pattern.permute.xlu0 %v598
        %600 = vperm.xlu0 %599, %v559
        %v601 = vpop.permute.xlu0 %600
        %v602 = vlaneseq
        %v603 = vshrl.u32 %v602, 7
        %v604 = vadd.s32 %v603, 56
        %605 = vset.pattern.permute.xlu0 %v604
        %606 = vperm.xlu0 %605, %v559
        %v607 = vpop.permute.xlu0 %606
        %v608 = vlaneseq
        %v609 = vshrl.u32 %v608, 7
        %v610 = vadd.s32 %v609, 64
        %611 = vset.pattern.permute.xlu0 %v610
        %612 = vperm.xlu0 %611, %v559
        %v613 = vpop.permute.xlu0 %612
        %v614 = vlaneseq
        %v615 = vshrl.u32 %v614, 7
        %v616 = vadd.s32 %v615, 72
        %617 = vset.pattern.permute.xlu0 %v616
        %618 = vperm.xlu0 %617, %v559
        %v619 = vpop.permute.xlu0 %618
        %v620 = vlaneseq
        %v621 = vshrl.u32 %v620, 7
        %v622 = vadd.s32 %v621, 80
        %623 = vset.pattern.permute.xlu0 %v622
        %624 = vperm.xlu0 %623, %v559
        %v625 = vpop.permute.xlu0 %624
        %v626 = vlaneseq
        %v627 = vshrl.u32 %v626, 7
        %v628 = vadd.s32 %v627, 88
        %629 = vset.pattern.permute.xlu0 %v628
        %630 = vperm.xlu0 %629, %v559
        %v631 = vpop.permute.xlu0 %630
        %v632 = vlaneseq
        %v633 = vshrl.u32 %v632, 7
        %v634 = vadd.s32 %v633, 96
        %635 = vset.pattern.permute.xlu0 %v634
        %636 = vperm.xlu0 %635, %v559
        %v637 = vpop.permute.xlu0 %636
        %v638 = vlaneseq
        %v639 = vshrl.u32 %v638, 7
        %v640 = vadd.s32 %v639, 104
        %641 = vset.pattern.permute.xlu0 %v640
        %642 = vperm.xlu0 %641, %v559
        %v643 = vpop.permute.xlu0 %642
        %v644 = vlaneseq
        %v645 = vshrl.u32 %v644, 7
        %v646 = vadd.s32 %v645, 112
        %647 = vset.pattern.permute.xlu0 %v646
        %648 = vperm.xlu0 %647, %v559
        %v649 = vpop.permute.xlu0 %648
        %v650 = vlaneseq
        %v651 = vshrl.u32 %v650, 7
        %v652 = vadd.s32 %v651, 120
        %653 = vset.pattern.permute.xlu0 %v652
        %654 = vperm.xlu0 %653, %v559
        %v655 = vpop.permute.xlu0 %654
        %vm656 = vcmp.eq.s32.totalorder %v274, %v263
        %vm657 = vcmp.eq.s32.totalorder %v280, %v263
        %vm658 = vcmp.eq.s32.totalorder %v286, %v263
        %vm659 = vcmp.eq.s32.totalorder %v292, %v263
        %vm660 = vcmp.eq.s32.totalorder %v298, %v263
        %vm661 = vcmp.eq.s32.totalorder %v304, %v263
        %vm662 = vcmp.eq.s32.totalorder %v310, %v263
        %vm663 = vcmp.eq.s32.totalorder %v316, %v263
        %vm664 = vcmp.eq.s32.totalorder %v322, %v263
        %vm665 = vcmp.eq.s32.totalorder %v328, %v263
        %vm666 = vcmp.eq.s32.totalorder %v334, %v263
        %vm667 = vcmp.eq.s32.totalorder %v340, %v263
        %vm668 = vcmp.eq.s32.totalorder %v346, %v263
        %vm669 = vcmp.eq.s32.totalorder %v352, %v263
        %vm670 = vcmp.eq.s32.totalorder %v358, %v263
        %vm671 = vcmp.eq.s32.totalorder %v364, %v263
        %vm672 = vcmp.eq.s32.totalorder %v371, %v263
        %vm673 = vcmp.eq.s32.totalorder %v377, %v263
        %vm674 = vcmp.eq.s32.totalorder %v383, %v263
        %vm675 = vcmp.eq.s32.totalorder %v389, %v263
        %vm676 = vcmp.eq.s32.totalorder %v395, %v263
        %vm677 = vcmp.eq.s32.totalorder %v401, %v263
        %vm678 = vcmp.eq.s32.totalorder %v407, %v263
        %vm679 = vcmp.eq.s32.totalorder %v413, %v263
        %vm680 = vcmp.eq.s32.totalorder %v419, %v263
        %vm681 = vcmp.eq.s32.totalorder %v425, %v263
        %vm682 = vcmp.eq.s32.totalorder %v431, %v263
        %vm683 = vcmp.eq.s32.totalorder %v437, %v263
        %vm684 = vcmp.eq.s32.totalorder %v443, %v263
        %vm685 = vcmp.eq.s32.totalorder %v449, %v263
        %vm686 = vcmp.eq.s32.totalorder %v455, %v263
        %vm687 = vcmp.eq.s32.totalorder %v461, %v263
        %vm688 = vcmp.eq.s32.totalorder %v468, %v263
        %vm689 = vcmp.eq.s32.totalorder %v474, %v263
        %vm690 = vcmp.eq.s32.totalorder %v480, %v263
        %vm691 = vcmp.eq.s32.totalorder %v486, %v263
        %vm692 = vcmp.eq.s32.totalorder %v492, %v263
        %vm693 = vcmp.eq.s32.totalorder %v498, %v263
        %vm694 = vcmp.eq.s32.totalorder %v504, %v263
        %vm695 = vcmp.eq.s32.totalorder %v510, %v263
        %vm696 = vcmp.eq.s32.totalorder %v516, %v263
        %vm697 = vcmp.eq.s32.totalorder %v522, %v263
        %vm698 = vcmp.eq.s32.totalorder %v528, %v263
        %vm699 = vcmp.eq.s32.totalorder %v534, %v263
        %vm700 = vcmp.eq.s32.totalorder %v540, %v263
        %vm701 = vcmp.eq.s32.totalorder %v546, %v263
        %vm702 = vcmp.eq.s32.totalorder %v552, %v263
        %vm703 = vcmp.eq.s32.totalorder %v558, %v263
        %vm704 = vcmp.eq.s32.totalorder %v565, %v263
        %vm705 = vcmp.eq.s32.totalorder %v571, %v263
        %vm706 = vcmp.eq.s32.totalorder %v577, %v263
        %vm707 = vcmp.eq.s32.totalorder %v583, %v263
        %vm708 = vcmp.eq.s32.totalorder %v589, %v263
        %vm709 = vcmp.eq.s32.totalorder %v595, %v263
        %vm710 = vcmp.eq.s32.totalorder %v601, %v263
        %vm711 = vcmp.eq.s32.totalorder %v607, %v263
        %vm712 = vcmp.eq.s32.totalorder %v613, %v263
        %vm713 = vcmp.eq.s32.totalorder %v619, %v263
        %vm714 = vcmp.eq.s32.totalorder %v625, %v263
        %vm715 = vcmp.eq.s32.totalorder %v631, %v263
        %vm716 = vcmp.eq.s32.totalorder %v637, %v263
        %vm717 = vcmp.eq.s32.totalorder %v643, %v263
        %vm718 = vcmp.eq.s32.totalorder %v649, %v263
        %vm719 = vcmp.eq.s32.totalorder %v655, %v263
        %v720 = vsel %vm656, 1, 0
        %v721 = vsel %vm657, 1, 0
        %v722 = vsel %vm658, 1, 0
        %v723 = vsel %vm659, 1, 0
        %v724 = vsel %vm660, 1, 0
        %v725 = vsel %vm661, 1, 0
        %v726 = vsel %vm662, 1, 0
        %v727 = vsel %vm663, 1, 0
        %v728 = vsel %vm664, 1, 0
        %v729 = vsel %vm665, 1, 0
        %v730 = vsel %vm666, 1, 0
        %v731 = vsel %vm667, 1, 0
        %v732 = vsel %vm668, 1, 0
        %v733 = vsel %vm669, 1, 0
        %v734 = vsel %vm670, 1, 0
        %v735 = vsel %vm671, 1, 0
        %v736 = vsel %vm672, 1, 0
        %v737 = vsel %vm673, 1, 0
        %v738 = vsel %vm674, 1, 0
        %v739 = vsel %vm675, 1, 0
        %v740 = vsel %vm676, 1, 0
        %v741 = vsel %vm677, 1, 0
        %v742 = vsel %vm678, 1, 0
        %v743 = vsel %vm679, 1, 0
        %v744 = vsel %vm680, 1, 0
        %v745 = vsel %vm681, 1, 0
        %v746 = vsel %vm682, 1, 0
        %v747 = vsel %vm683, 1, 0
        %v748 = vsel %vm684, 1, 0
        %v749 = vsel %vm685, 1, 0
        %v750 = vsel %vm686, 1, 0
        %v751 = vsel %vm687, 1, 0
        %v752 = vsel %vm688, 1, 0
        %v753 = vsel %vm689, 1, 0
        %v754 = vsel %vm690, 1, 0
        %v755 = vsel %vm691, 1, 0
        %v756 = vsel %vm692, 1, 0
        %v757 = vsel %vm693, 1, 0
        %v758 = vsel %vm694, 1, 0
        %v759 = vsel %vm695, 1, 0
        %v760 = vsel %vm696, 1, 0
        %v761 = vsel %vm697, 1, 0
        %v762 = vsel %vm698, 1, 0
        %v763 = vsel %vm699, 1, 0
        %v764 = vsel %vm700, 1, 0
        %v765 = vsel %vm701, 1, 0
        %v766 = vsel %vm702, 1, 0
        %v767 = vsel %vm703, 1, 0
        %v768 = vsel %vm704, 1, 0
        %v769 = vsel %vm705, 1, 0
        %v770 = vsel %vm706, 1, 0
        %v771 = vsel %vm707, 1, 0
        %v772 = vsel %vm708, 1, 0
        %v773 = vsel %vm709, 1, 0
        %v774 = vsel %vm710, 1, 0
        %v775 = vsel %vm711, 1, 0
        %v776 = vsel %vm712, 1, 0
        %v777 = vsel %vm713, 1, 0
        %v778 = vsel %vm714, 1, 0
        %v779 = vsel %vm715, 1, 0
        %v780 = vsel %vm716, 1, 0
        %v781 = vsel %vm717, 1, 0
        %v782 = vsel %vm718, 1, 0
        %v783 = vsel %vm719, 1, 0
        %v784 = vcvt.s32.f32 %v720
        %v785 = vcvt.s32.f32 %v721
        %v786 = vcvt.s32.f32 %v722
        %v787 = vcvt.s32.f32 %v723
        %v788 = vcvt.s32.f32 %v724
        %v789 = vcvt.s32.f32 %v725
        %v790 = vcvt.s32.f32 %v726
        %v791 = vcvt.s32.f32 %v727
        %v792 = vcvt.s32.f32 %v728
        %v793 = vcvt.s32.f32 %v729
        %v794 = vcvt.s32.f32 %v730
        %v795 = vcvt.s32.f32 %v731
        %v796 = vcvt.s32.f32 %v732
        %v797 = vcvt.s32.f32 %v733
        %v798 = vcvt.s32.f32 %v734
        %v799 = vcvt.s32.f32 %v735
        %v800 = vcvt.s32.f32 %v736
        %v801 = vcvt.s32.f32 %v737
        %v802 = vcvt.s32.f32 %v738
        %v803 = vcvt.s32.f32 %v739
        %v804 = vcvt.s32.f32 %v740
        %v805 = vcvt.s32.f32 %v741
        %v806 = vcvt.s32.f32 %v742
        %v807 = vcvt.s32.f32 %v743
        %v808 = vcvt.s32.f32 %v744
        %v809 = vcvt.s32.f32 %v745
        %v810 = vcvt.s32.f32 %v746
        %v811 = vcvt.s32.f32 %v747
        %v812 = vcvt.s32.f32 %v748
        %v813 = vcvt.s32.f32 %v749
        %v814 = vcvt.s32.f32 %v750
        %v815 = vcvt.s32.f32 %v751
        %v816 = vcvt.s32.f32 %v752
        %v817 = vcvt.s32.f32 %v753
        %v818 = vcvt.s32.f32 %v754
        %v819 = vcvt.s32.f32 %v755
        %v820 = vcvt.s32.f32 %v756
        %v821 = vcvt.s32.f32 %v757
        %v822 = vcvt.s32.f32 %v758
        %v823 = vcvt.s32.f32 %v759
        %v824 = vcvt.s32.f32 %v760
        %v825 = vcvt.s32.f32 %v761
        %v826 = vcvt.s32.f32 %v762
        %v827 = vcvt.s32.f32 %v763
        %v828 = vcvt.s32.f32 %v764
        %v829 = vcvt.s32.f32 %v765
        %v830 = vcvt.s32.f32 %v766
        %v831 = vcvt.s32.f32 %v767
        %v832 = vcvt.s32.f32 %v768
        %v833 = vcvt.s32.f32 %v769
        %v834 = vcvt.s32.f32 %v770
        %v835 = vcvt.s32.f32 %v771
        %v836 = vcvt.s32.f32 %v772
        %v837 = vcvt.s32.f32 %v773
        %v838 = vcvt.s32.f32 %v774
        %v839 = vcvt.s32.f32 %v775
        %v840 = vcvt.s32.f32 %v776
        %v841 = vcvt.s32.f32 %v777
        %v842 = vcvt.s32.f32 %v778
        %v843 = vcvt.s32.f32 %v779
        %v844 = vcvt.s32.f32 %v780
        %v845 = vcvt.s32.f32 %v781
        %v846 = vcvt.s32.f32 %v782
        %v847 = vcvt.s32.f32 %v783
        %v848 = vpack.c.bf16 %v785, %v784
        %v849 = vpack.c.bf16 %v787, %v786
        %v850 = vpack.c.bf16 %v789, %v788
        %v851 = vpack.c.bf16 %v791, %v790
        %v852 = vpack.c.bf16 %v793, %v792
        %v853 = vpack.c.bf16 %v795, %v794
        %v854 = vpack.c.bf16 %v797, %v796
        %v855 = vpack.c.bf16 %v799, %v798
        %v856 = vpack.c.bf16 %v801, %v800
        %v857 = vpack.c.bf16 %v803, %v802
        %v858 = vpack.c.bf16 %v805, %v804
        %v859 = vpack.c.bf16 %v807, %v806
        %v860 = vpack.c.bf16 %v809, %v808
        %v861 = vpack.c.bf16 %v811, %v810
        %v862 = vpack.c.bf16 %v813, %v812
        %v863 = vpack.c.bf16 %v815, %v814
        %v864 = vpack.c.bf16 %v817, %v816
        %v865 = vpack.c.bf16 %v819, %v818
        %v866 = vpack.c.bf16 %v821, %v820
        %v867 = vpack.c.bf16 %v823, %v822
        %v868 = vpack.c.bf16 %v825, %v824
        %v869 = vpack.c.bf16 %v827, %v826
        %v870 = vpack.c.bf16 %v829, %v828
        %v871 = vpack.c.bf16 %v831, %v830
        %v872 = vpack.c.bf16 %v833, %v832
        %v873 = vpack.c.bf16 %v835, %v834
        %v874 = vpack.c.bf16 %v837, %v836
        %v875 = vpack.c.bf16 %v839, %v838
        %v876 = vpack.c.bf16 %v841, %v840
        %v877 = vpack.c.bf16 %v843, %v842
        %v878 = vpack.c.bf16 %v845, %v844
        %v879 = vpack.c.bf16 %v847, %v846
        %v880 = vld [vmem:[#allocation9] sm:$0xf]
        %v881 = vld [vmem:[#allocation9 + $0x4] sm:$0xf]
        %v882 = vld [vmem:[#allocation9 + $0x8] sm:$0xf]
        %v883 = vld [vmem:[#allocation9 + $0xc] sm:$0xf]
        %v884 = vld [vmem:[#allocation9 + $0x10] sm:$0xf]
        %v885 = vld [vmem:[#allocation9 + $0x14] sm:$0xf]
        %v886 = vld [vmem:[#allocation9 + $0x18] sm:$0xf]
        %v887 = vld [vmem:[#allocation9 + $0x1c] sm:$0xf]
        %v888 = vld [vmem:[#allocation9 + $0x20] sm:$0xf]
        %v889 = vld [vmem:[#allocation9 + $0x24] sm:$0xf]
        %v890 = vld [vmem:[#allocation9 + $0x28] sm:$0xf]
        %v891 = vld [vmem:[#allocation9 + $0x2c] sm:$0xf]
        %v892 = vld [vmem:[#allocation9 + $0x30] sm:$0xf]
        %v893 = vld [vmem:[#allocation9 + $0x34] sm:$0xf]
        %v894 = vld [vmem:[#allocation9 + $0x38] sm:$0xf]
        %v895 = vld [vmem:[#allocation9 + $0x3c] sm:$0xf]
        %v912 = vunpack.c.l.b16 %v880
        %v913 = vunpack.c.l.b16 %v881
        %v914 = vunpack.c.l.b16 %v882
        %v915 = vunpack.c.l.b16 %v883
        %v916 = vunpack.c.l.b16 %v884
        %v917 = vunpack.c.l.b16 %v885
        %v918 = vunpack.c.l.b16 %v886
        %v919 = vunpack.c.l.b16 %v887
        %v920 = vunpack.c.l.b16 %v888
        %v921 = vunpack.c.l.b16 %v889
        %v922 = vunpack.c.l.b16 %v890
        %v923 = vunpack.c.l.b16 %v891
        %v924 = vunpack.c.l.b16 %v892
        %v925 = vunpack.c.l.b16 %v893
        %v926 = vunpack.c.l.b16 %v894
        %v927 = vunpack.c.l.b16 %v895
        %v928 = vpack.c.b16 %v913, %v912
        %v929 = vpack.c.b16 %v915, %v914
        %v930 = vpack.c.b16 %v917, %v916
        %v931 = vpack.c.b16 %v919, %v918
        %v932 = vpack.c.b16 %v921, %v920
        %v933 = vpack.c.b16 %v923, %v922
        %v934 = vpack.c.b16 %v925, %v924
        %v935 = vpack.c.b16 %v927, %v926
        %944 = vmatpush.bf16.msra.mxu0 %v935
        %945 = vmatpush.bf16.msra.mxu0 %v934
        %946 = vmatpush.bf16.msra.mxu0 %v933
        %947 = vmatpush.bf16.msra.mxu0 %v932
        %948 = vmatpush.bf16.msra.mxu0 %v931
        %949 = vmatpush.bf16.msra.mxu0 %v930
        %950 = vmatpush.bf16.msra.mxu0 %v929
        %951 = vmatpush.bf16.msra.mxu0 %v928
        %952 = vmatmul.bf16.gmra.mxu0 %v848
        %v953 = vpop.f32.mrf.mxu0
        %v954 = vadd.f32 0.0, %v953
        %v955 = vpop.f32.mrf.mxu0
        %v956 = vadd.f32 0.0, %v955
        %957 = vmatmul.bf16.gmra.mxu0 %v849
        %v958 = vpop.f32.mrf.mxu0
        %v959 = vadd.f32 0.0, %v958
        %v960 = vpop.f32.mrf.mxu0
        %v961 = vadd.f32 0.0, %v960
        %962 = vmatmul.bf16.gmra.mxu0 %v850
        %v963 = vpop.f32.mrf.mxu0
        %v964 = vadd.f32 0.0, %v963
        %v965 = vpop.f32.mrf.mxu0
        %v966 = vadd.f32 0.0, %v965
        %967 = vmatmul.bf16.gmra.mxu0 %v851
        %v968 = vpop.f32.mrf.mxu0
        %v969 = vadd.f32 0.0, %v968
        %v970 = vpop.f32.mrf.mxu0
        %v971 = vadd.f32 0.0, %v970
        %972 = vmatmul.bf16.gmra.mxu0 %v852
        %v973 = vpop.f32.mrf.mxu0
        %v974 = vadd.f32 0.0, %v973
        %v975 = vpop.f32.mrf.mxu0
        %v976 = vadd.f32 0.0, %v975
        %977 = vmatmul.bf16.gmra.mxu0 %v853
        %v978 = vpop.f32.mrf.mxu0
        %v979 = vadd.f32 0.0, %v978
        %v980 = vpop.f32.mrf.mxu0
        %v981 = vadd.f32 0.0, %v980
        %982 = vmatmul.bf16.gmra.mxu0 %v854
        %v983 = vpop.f32.mrf.mxu0
        %v984 = vadd.f32 0.0, %v983
        %v985 = vpop.f32.mrf.mxu0
        %v986 = vadd.f32 0.0, %v985
        %987 = vmatmul.bf16.gmra.mxu0 %v855
        %v988 = vpop.f32.mrf.mxu0
        %v989 = vadd.f32 0.0, %v988
        %v990 = vpop.f32.mrf.mxu0
        %v991 = vadd.f32 0.0, %v990
        %992 = vmatmul.bf16.gmra.mxu0 %v856
        %v993 = vpop.f32.mrf.mxu0
        %v994 = vadd.f32 0.0, %v993
        %v995 = vpop.f32.mrf.mxu0
        %v996 = vadd.f32 0.0, %v995
        %997 = vmatmul.bf16.gmra.mxu0 %v857
        %v998 = vpop.f32.mrf.mxu0
        %v999 = vadd.f32 0.0, %v998
        %v1000 = vpop.f32.mrf.mxu0
        %v1001 = vadd.f32 0.0, %v1000
        %1002 = vmatmul.bf16.gmra.mxu0 %v858
        %v1003 = vpop.f32.mrf.mxu0
        %v1004 = vadd.f32 0.0, %v1003
        %v1005 = vpop.f32.mrf.mxu0
        %v1006 = vadd.f32 0.0, %v1005
        %1007 = vmatmul.bf16.gmra.mxu0 %v859
        %v1008 = vpop.f32.mrf.mxu0
        %v1009 = vadd.f32 0.0, %v1008
        %v1010 = vpop.f32.mrf.mxu0
        %v1011 = vadd.f32 0.0, %v1010
        %1012 = vmatmul.bf16.gmra.mxu0 %v860
        %v1013 = vpop.f32.mrf.mxu0
        %v1014 = vadd.f32 0.0, %v1013
        %v1015 = vpop.f32.mrf.mxu0
        %v1016 = vadd.f32 0.0, %v1015
        %1017 = vmatmul.bf16.gmra.mxu0 %v861
        %v1018 = vpop.f32.mrf.mxu0
        %v1019 = vadd.f32 0.0, %v1018
        %v1020 = vpop.f32.mrf.mxu0
        %v1021 = vadd.f32 0.0, %v1020
        %1022 = vmatmul.bf16.gmra.mxu0 %v862
        %v1023 = vpop.f32.mrf.mxu0
        %v1024 = vadd.f32 0.0, %v1023
        %v1025 = vpop.f32.mrf.mxu0
        %v1026 = vadd.f32 0.0, %v1025
        %1027 = vmatmul.bf16.gmra.mxu0 %v863
        %v1028 = vpop.f32.mrf.mxu0
        %v1029 = vadd.f32 0.0, %v1028
        %v1030 = vpop.f32.mrf.mxu0
        %v1031 = vadd.f32 0.0, %v1030
        %1032 = vmatmul.bf16.gmra.mxu0 %v864
        %v1033 = vpop.f32.mrf.mxu0
        %v1034 = vadd.f32 0.0, %v1033
        %v1035 = vpop.f32.mrf.mxu0
        %v1036 = vadd.f32 0.0, %v1035
        %1037 = vmatmul.bf16.gmra.mxu0 %v865
        %v1038 = vpop.f32.mrf.mxu0
        %v1039 = vadd.f32 0.0, %v1038
        %v1040 = vpop.f32.mrf.mxu0
        %v1041 = vadd.f32 0.0, %v1040
        %1042 = vmatmul.bf16.gmra.mxu0 %v866
        %v1043 = vpop.f32.mrf.mxu0
        %v1044 = vadd.f32 0.0, %v1043
        %v1045 = vpop.f32.mrf.mxu0
        %v1046 = vadd.f32 0.0, %v1045
        %1047 = vmatmul.bf16.gmra.mxu0 %v867
        %v1048 = vpop.f32.mrf.mxu0
        %v1049 = vadd.f32 0.0, %v1048
        %v1050 = vpop.f32.mrf.mxu0
        %v1051 = vadd.f32 0.0, %v1050
        %1052 = vmatmul.bf16.gmra.mxu0 %v868
        %v1053 = vpop.f32.mrf.mxu0
        %v1054 = vadd.f32 0.0, %v1053
        %v1055 = vpop.f32.mrf.mxu0
        %v1056 = vadd.f32 0.0, %v1055
        %1057 = vmatmul.bf16.gmra.mxu0 %v869
        %v1058 = vpop.f32.mrf.mxu0
        %v1059 = vadd.f32 0.0, %v1058
        %v1060 = vpop.f32.mrf.mxu0
        %v1061 = vadd.f32 0.0, %v1060
        %1062 = vmatmul.bf16.gmra.mxu0 %v870
        %v1063 = vpop.f32.mrf.mxu0
        %v1064 = vadd.f32 0.0, %v1063
        %v1065 = vpop.f32.mrf.mxu0
        %v1066 = vadd.f32 0.0, %v1065
        %1067 = vmatmul.bf16.gmra.mxu0 %v871
        %v1068 = vpop.f32.mrf.mxu0
        %v1069 = vadd.f32 0.0, %v1068
        %v1070 = vpop.f32.mrf.mxu0
        %v1071 = vadd.f32 0.0, %v1070
        %1072 = vmatmul.bf16.gmra.mxu0 %v872
        %v1073 = vpop.f32.mrf.mxu0
        %v1074 = vadd.f32 0.0, %v1073
        %v1075 = vpop.f32.mrf.mxu0
        %v1076 = vadd.f32 0.0, %v1075
        %1077 = vmatmul.bf16.gmra.mxu0 %v873
        %v1078 = vpop.f32.mrf.mxu0
        %v1079 = vadd.f32 0.0, %v1078
        %v1080 = vpop.f32.mrf.mxu0
        %v1081 = vadd.f32 0.0, %v1080
        %1082 = vmatmul.bf16.gmra.mxu0 %v874
        %v1083 = vpop.f32.mrf.mxu0
        %v1084 = vadd.f32 0.0, %v1083
        %v1085 = vpop.f32.mrf.mxu0
        %v1086 = vadd.f32 0.0, %v1085
        %1087 = vmatmul.bf16.gmra.mxu0 %v875
        %v1088 = vpop.f32.mrf.mxu0
        %v1089 = vadd.f32 0.0, %v1088
        %v1090 = vpop.f32.mrf.mxu0
        %v1091 = vadd.f32 0.0, %v1090
        %1092 = vmatmul.bf16.gmra.mxu0 %v876
        %v1093 = vpop.f32.mrf.mxu0
        %v1094 = vadd.f32 0.0, %v1093
        %v1095 = vpop.f32.mrf.mxu0
        %v1096 = vadd.f32 0.0, %v1095
        %1097 = vmatmul.bf16.gmra.mxu0 %v877
        %v1098 = vpop.f32.mrf.mxu0
        %v1099 = vadd.f32 0.0, %v1098
        %v1100 = vpop.f32.mrf.mxu0
        %v1101 = vadd.f32 0.0, %v1100
        %1102 = vmatmul.bf16.gmra.mxu0 %v878
        %v1103 = vpop.f32.mrf.mxu0
        %v1104 = vadd.f32 0.0, %v1103
        %v1105 = vpop.f32.mrf.mxu0
        %v1106 = vadd.f32 0.0, %v1105
        %1107 = vmatmul.bf16.gmra.mxu0 %v879
        %v1108 = vpop.f32.mrf.mxu0
        %v1109 = vadd.f32 0.0, %v1108
        %v1110 = vpop.f32.mrf.mxu0
        %v1111 = vadd.f32 0.0, %v1110
        %1112 = vdwg.mxu0
        %v1113 = vlaneseq
        %v1114 = vshrl.u32 %v1113, 7
        %v1115 = vadd.s32 %v1114, 8
        %s1116 = smul.u32 %s25, 16
        %v1117 = vstv %s1116
        %v1118 = vadd.s32 %v1114, %v1117
        %v1119 = vadd.s32 %v1115, %v1117
        %v1120 = vperm.slane %v261, 0
        %v1121 = vperm.slane %v261, 1
        %v1122 = vperm.slane %v261, 2
        %v1123 = vperm.slane %v261, 3
        %vm1124 = vcmp.eq.s32.totalorder %v1120, %v1118
        %vm1125 = vcmp.eq.s32.totalorder %v1121, %v1118
        %vm1126 = vcmp.eq.s32.totalorder %v1122, %v1118
        %vm1127 = vcmp.eq.s32.totalorder %v1123, %v1118
        %vm1128 = vcmp.eq.s32.totalorder %v1120, %v1119
        %vm1129 = vcmp.eq.s32.totalorder %v1121, %v1119
        %vm1130 = vcmp.eq.s32.totalorder %v1122, %v1119
        %vm1131 = vcmp.eq.s32.totalorder %v1123, %v1119
        %v1132 = vld [vmem:[#allocation2] sm:$0xff]
        %v1133 = vld [vmem:[#allocation2 + $0x8] sm:$0xff]
        %v1134 = vsel %vm1124, 1, 0
        %v1135 = vsel %vm1125, 1, 0
        %v1136 = vsel %vm1126, 1, 0
        %v1137 = vsel %vm1127, 1, 0
        %v1138 = vsel %vm1128, 1, 0
        %v1139 = vsel %vm1129, 1, 0
        %v1140 = vsel %vm1130, 1, 0
        %v1141 = vsel %vm1131, 1, 0
        %v1142 = vcvt.s32.f32 %v1134
        %v1143 = vcvt.s32.f32 %v1135
        %v1144 = vcvt.s32.f32 %v1136
        %v1145 = vcvt.s32.f32 %v1137
        %v1146 = vcvt.s32.f32 %v1138
        %v1147 = vcvt.s32.f32 %v1139
        %v1148 = vcvt.s32.f32 %v1140
        %v1149 = vcvt.s32.f32 %v1141
        %v1150 = vpack.c.bf16 %v1146, %v1142
        %v1151 = vpack.c.bf16 %v1147, %v1143
        %v1152 = vpack.c.bf16 %v1148, %v1144
        %v1153 = vpack.c.bf16 %v1149, %v1145
        %v1154 = vpack.c.bf16 %v956, %v954
        %v1155 = vpack.c.bf16 %v961, %v959
        %v1156 = vpack.c.bf16 %v966, %v964
        %v1157 = vpack.c.bf16 %v971, %v969
        %v1158 = vpack.c.bf16 %v976, %v974
        %v1159 = vpack.c.bf16 %v981, %v979
        %v1160 = vpack.c.bf16 %v986, %v984
        %v1161 = vpack.c.bf16 %v991, %v989
        %v1162 = vpack.c.bf16 %v996, %v994
        %v1163 = vpack.c.bf16 %v1001, %v999
        %v1164 = vpack.c.bf16 %v1006, %v1004
        %v1165 = vpack.c.bf16 %v1011, %v1009
        %v1166 = vpack.c.bf16 %v1016, %v1014
        %v1167 = vpack.c.bf16 %v1021, %v1019
        %v1168 = vpack.c.bf16 %v1026, %v1024
        %v1169 = vpack.c.bf16 %v1031, %v1029
        %v1170 = vpack.c.bf16 %v1036, %v1034
        %v1171 = vpack.c.bf16 %v1041, %v1039
        %v1172 = vpack.c.bf16 %v1046, %v1044
        %v1173 = vpack.c.bf16 %v1051, %v1049
        %v1174 = vpack.c.bf16 %v1056, %v1054
        %v1175 = vpack.c.bf16 %v1061, %v1059
        %v1176 = vpack.c.bf16 %v1066, %v1064
        %v1177 = vpack.c.bf16 %v1071, %v1069
        %v1178 = vpack.c.bf16 %v1076, %v1074
        %v1179 = vpack.c.bf16 %v1081, %v1079
        %v1180 = vpack.c.bf16 %v1086, %v1084
        %v1181 = vpack.c.bf16 %v1091, %v1089
        %v1182 = vpack.c.bf16 %v1096, %v1094
        %v1183 = vpack.c.bf16 %v1101, %v1099
        %v1184 = vpack.c.bf16 %v1106, %v1104
        %v1185 = vpack.c.bf16 %v1111, %v1109
        %1186 = vmatpush.bf16.msra.mxu0 %v1161
        %1187 = vmatpush.bf16.msra.mxu0 %v1160
        %1188 = vmatpush.bf16.msra.mxu0 %v1159
        %1189 = vmatpush.bf16.msra.mxu0 %v1158
        %1190 = vmatpush.bf16.msra.mxu0 %v1157
        %1191 = vmatpush.bf16.msra.mxu0 %v1156
        %1192 = vmatpush.bf16.msra.mxu0 %v1155
        %1193 = vmatpush.bf16.msra.mxu0 %v1154
        %1194 = vmatmul.bf16.gmra.mxu0 %v1150
        %v1195 = vpop.f32.mrf.mxu0
        %v1196 = vadd.f32 0.0, %v1195
        %v1197 = vpop.f32.mrf.mxu0
        %v1198 = vadd.f32 0.0, %v1197
        %1199 = vdwg.mxu0
        %1200 = vmatpush.bf16.msra.mxu0 %v1169
        %1201 = vmatpush.bf16.msra.mxu0 %v1168
        %1202 = vmatpush.bf16.msra.mxu0 %v1167
        %1203 = vmatpush.bf16.msra.mxu0 %v1166
        %1204 = vmatpush.bf16.msra.mxu0 %v1165
        %1205 = vmatpush.bf16.msra.mxu0 %v1164
        %1206 = vmatpush.bf16.msra.mxu0 %v1163
        %1207 = vmatpush.bf16.msra.mxu0 %v1162
        %1208 = vmatmul.bf16.gmra.mxu0 %v1151
        %v1209 = vpop.f32.mrf.mxu0
        %v1210 = vadd.f32 %v1196, %v1209
        %v1211 = vpop.f32.mrf.mxu0
        %v1212 = vadd.f32 %v1198, %v1211
        %1213 = vdwg.mxu0
        %1214 = vmatpush.bf16.msra.mxu0 %v1177
        %1215 = vmatpush.bf16.msra.mxu0 %v1176
        %1216 = vmatpush.bf16.msra.mxu0 %v1175
        %1217 = vmatpush.bf16.msra.mxu0 %v1174
        %1218 = vmatpush.bf16.msra.mxu0 %v1173
        %1219 = vmatpush.bf16.msra.mxu0 %v1172
        %1220 = vmatpush.bf16.msra.mxu0 %v1171
        %1221 = vmatpush.bf16.msra.mxu0 %v1170
        %1222 = vmatmul.bf16.gmra.mxu0 %v1152
        %v1223 = vpop.f32.mrf.mxu0
        %v1224 = vadd.f32 %v1210, %v1223
        %v1225 = vpop.f32.mrf.mxu0
        %v1226 = vadd.f32 %v1212, %v1225
        %1227 = vdwg.mxu0
        %1228 = vmatpush.bf16.msra.mxu0 %v1185
        %1229 = vmatpush.bf16.msra.mxu0 %v1184
        %1230 = vmatpush.bf16.msra.mxu0 %v1183
        %1231 = vmatpush.bf16.msra.mxu0 %v1182
        %1232 = vmatpush.bf16.msra.mxu0 %v1181
        %1233 = vmatpush.bf16.msra.mxu0 %v1180
        %1234 = vmatpush.bf16.msra.mxu0 %v1179
        %1235 = vmatpush.bf16.msra.mxu0 %v1178
        %1236 = vmatmul.bf16.gmra.mxu0 %v1153
        %v1237 = vpop.f32.mrf.mxu0
        %v1238 = vadd.f32 %v1224, %v1237
        %v1239 = vpop.f32.mrf.mxu0
        %v1240 = vadd.f32 %v1226, %v1239
        %1241 = vdwg.mxu0
        %v1242 = vadd.f32 %v1132, %v1238
        %v1243 = vadd.f32 %v1133, %v1240
        %1244 = vst [vmem:[#allocation2] sm:$0xff] %v1242
        %1245 = vst [vmem:[#allocation2 + $0x8] sm:$0xff] %v1243
        %v1246 = vld [vmem:[#allocation3] sm:$0xff]
        %v1247 = vld [vmem:[#allocation3 + $0x8] sm:$0xff]
        %v1248 = vadd.f32 %v1142, %v1143
        %v1249 = vadd.f32 %v1248, %v1144
        %v1250 = vadd.f32 %v1249, %v1145
        %1251 = vadd.xlane.f32.xlu0 %v1250
        %v1252 = vpop.xlane.xlu0 %1251
        %v1253 = vadd.f32 %v1146, %v1147
        %v1254 = vadd.f32 %v1253, %v1148
        %v1255 = vadd.f32 %v1254, %v1149
        %1256 = vadd.xlane.f32.xlu0 %v1255
        %v1257 = vpop.xlane.xlu0 %1256
        %v1258 = vadd.f32 %v1246, %v1252
        %v1259 = vadd.f32 %v1247, %v1257
        %vm1260 = vcmask 7168
        %1261 = vst.msk [vmem:[#allocation3] sm:$0xff] %vm1260, %v1258
        %1262 = vst.msk [vmem:[#allocation3 + $0x8] sm:$0xff] %vm1260, %v1259
        %p1263 = scmp.eq.s32.totalorder %s26, 2
        // Predicated region
        $region49: #{tpu_custom_call.1} parent=31 // pred_check
          %p1264 = pneg %p1263
        $region50: #{tpu_custom_call.1} parent=31 // pred_check_branch
          %1266 = sbr.rel (%p1264) target = $region52
        $region51: #{tpu_custom_call.1} parent=31 // pred_region
          %v1267 = vld [vmem:[#allocation2] sm:$0xff]
          %v1268 = vld [vmem:[#allocation2 + $0x8] sm:$0xff]
          %v1269 = vld [vmem:[#allocation3] sm:$0xff]
          %v1270 = vld [vmem:[#allocation3 + $0x8] sm:$0xff]
          %v1271 = vmax.f32 %v1269, 1.0
          %v1272 = vmax.f32 %v1270, 1.0
          %1274 = vset.pattern.permute.xlu0 0
          %1275 = vperm.xlu0 %1274, %v1271
          %v1276 = vpop.permute.xlu0 %1275
          %1279 = vset.pattern.permute.xlu0 0
          %1280 = vperm.xlu0 %1279, %v1272
          %v1281 = vpop.permute.xlu0 %1280
          %v1283 = vrcp.pop %v1276
          %v1284 = vmul.f32 %v1276, %v1283
          %v1285 = vsub.f32 1.0, %v1284
          %v1286 = vmul.f32 %v1283, %v1285
          %v1287 = vadd.f32 %v1283, %v1286
          %vm1288 = vweird.f32 %v1276
          %vm1289 = vweird.f32 %v1283
          %vm1290 = vmor %vm1288, %vm1289
          %v1291 = vsel %vm1290, %v1283, %v1287
          %v1292 = vand.u32 2147483647, %v1276
          %vm1293 = vcmp.eq.f32.partialorder %v1292, 8.507059e+37
          %v1294 = vand.u32 %v1276, 2147483648
          %v1295 = vor.u32 1.1754944e-38, %v1294
          %v1296 = vsel %vm1293, %v1295, %v1291
          %v1297 = vmul.f32 %v1267, %v1296
          %v1298 = vrcp.pop %v1281
          %v1299 = vmul.f32 %v1281, %v1298
          %v1300 = vsub.f32 1.0, %v1299
          %v1301 = vmul.f32 %v1298, %v1300
          %v1302 = vadd.f32 %v1298, %v1301
          %vm1303 = vweird.f32 %v1281
          %vm1304 = vweird.f32 %v1298
          %vm1305 = vmor %vm1303, %vm1304
          %v1306 = vsel %vm1305, %v1298, %v1302
          %v1307 = vand.u32 2147483647, %v1281
          %vm1308 = vcmp.eq.f32.partialorder %v1307, 8.507059e+37
          %v1309 = vand.u32 %v1281, 2147483648
          %v1310 = vor.u32 1.1754944e-38, %v1309
          %v1311 = vsel %vm1308, %v1310, %v1306
          %v1312 = vmul.f32 %v1268, %v1311
          %1313 = vst [vmem:[#allocation10] sm:$0xff] %v1297
          %1314 = vst [vmem:[#allocation10 + $0x8] sm:$0xff] %v1312
        $region52: #{tpu_custom_call.1} parent=31 // pred_fallthru
          _
        // Predicated region
        $region53: #{tpu_custom_call.1} parent=31 // pred_check
          %p1315 = pneg %p124
        $region54: #{tpu_custom_call.1} parent=31 // pred_check_branch
          %1317 = sbr.rel (%p1315) target = $region56
        $region55: #{tpu_custom_call.1} parent=31 // pred_region
          %s1318 = smul.u32 2, %s25
          %1320 = vsyncadd [#allocation6], 0
          %s1321 = smul.addr %s1318, 8
          %s1322 = scalar_lea.hbm %s3, %s1321
          %s1323 = sshll.u32 [#allocation10], 4
          %s1324 = int_to_ptr.vmem [resolvable:$true] %s1323
          %s1325 = sshll.u32 %s1322, 4
          %s1326 = int_to_ptr.hbm [resolvable:$true] %s1325
          %1331 = dma.vmem_to_hbm [thread:$0]  %s1324, 256, %s1326, [#allocation6], 128, 128, 8
        $region56: #{tpu_custom_call.1} parent=31 // pred_fallthru
          _
        // Predicated region
        $region57: #{tpu_custom_call.1} parent=31 // pred_check
          %p1332 = pneg %p124
        $region58: #{tpu_custom_call.1} parent=31 // pred_check_branch
          %1334 = sbr.rel (%p1332) target = $region60
        $region59: #{tpu_custom_call.1} parent=31 // pred_region
          %1336 = dma.done [#allocation6], 256
        $region60: #{tpu_custom_call.1} parent=31 // pred_fallthru
          _
      $region32: #{tpu_custom_call.1} parent=5 // pred_fallthru
        _
      %p1337 = scmp.le.s32.totalorder 2, %s16
      // Predicated region
      $region61: #{tpu_custom_call.1} parent=5 // pred_check
        %p1338 = pneg %p1337
      $region62: #{tpu_custom_call.1} parent=5 // pred_check_branch
        %1340 = sbr.rel (%p1338) target = $region64
      $region63: #{tpu_custom_call.1} parent=5 // pred_region
        %s1341 = ssub.s32 %s16, 2
      $region64: #{tpu_custom_call.1} parent=5 // pred_fallthru
        _
    $region6: #{tpu_custom_call.1} parent=1 // loop_footer
      %s20 = sadd.s32 1, %s16
    $region7: #{tpu_custom_call.1} parent=1 // loop_footer_branch
      %15 = sbr.rel target = $region3
    $region8: #{tpu_custom_call.1} parent=1 // loop_exit
      _
    %1342 = vsyncpa [#allocation5], 1
    %s1343 = scalar_lea.sflag [#allocation5], 1
    %1344 = vsyncpa %s1343, 1
    %1345 = vsyncpa [#allocation8], 1
    %s1346 = scalar_lea.sflag [#allocation8], 1
    %1347 = vsyncpa %s1346, 1
    %1348 = vsyncpa [#allocation6], 1
    %s1349 = scalar_lea.sflag [#allocation6], 1
    %1350 = vsyncpa %s1349, 1

</llo_original>
